<compile_context>
chip_gen: v7x
topology: tpu7x:2x2x1
jax: 0.10.0
libtpu: 0.0.40
codegen_flags: <defaults>
</compile_context>

<pallas_src>
import functools

import numpy as np
import jax
import jax.numpy as jnp
from jax import lax
from jax.experimental import pallas as pl
from jax.experimental.pallas import tpu as pltpu

NUM_CLASSES = 10
BN_EPS = 1e-3
_TK_MAX = 4096          # max K covered by a single k-step (covers every layer here)
_TN_MAX = 512           # max output-tile width
_VMEM_LIMIT = 32 * 1024 * 1024


def _round_up(x, m):
    return (x + m - 1) // m * m


def _pick_tile(dim_padded, max_tile):
    """Largest multiple of 128 that divides dim_padded and is <= max_tile."""
    if dim_padded <= max_tile:
        return dim_padded
    best = 128
    t = 128
    while t <= max_tile:
        if dim_padded % t == 0:
            best = t
        t += 128
    return best


# --------------------------------------------------------------------------
# Pallas kernel 1: fused matmul (bf16 -> f32 acc) + per-channel shift (+ ReLU)
# --------------------------------------------------------------------------
def _make_matmul_kernel_single(apply_relu):
    # Single k-step: no accumulator scratch, write straight to the output tile.
    def kernel(a_ref, w_ref, b_ref, o_ref):
        y = jnp.dot(a_ref[...], w_ref[...],
                    preferred_element_type=jnp.float32) + b_ref[...]
        if apply_relu:
            y = jnp.maximum(y, 0.0)
        o_ref[...] = y.astype(o_ref.dtype)
    return kernel


def _make_matmul_kernel_multi(apply_relu):
    def kernel(a_ref, w_ref, b_ref, o_ref, acc_ref):
        @pl.when(pl.program_id(2) == 0)
        def _():
            acc_ref[...] = jnp.zeros_like(acc_ref)

        acc_ref[...] += jnp.dot(a_ref[...], w_ref[...],
                                preferred_element_type=jnp.float32)

        @pl.when(pl.program_id(2) == pl.num_programs(2) - 1)
        def _():
            y = acc_ref[...] + b_ref[...]
            if apply_relu:
                y = jnp.maximum(y, 0.0)
            o_ref[...] = y.astype(o_ref.dtype)
    return kernel


@functools.lru_cache(maxsize=None)
def _get_matmul_fn(Mp, Kp, Np, tm, tn, tk, apply_relu, out_dtype_name):
    out_dtype = jnp.dtype(out_dtype_name)
    nk = Kp // tk
    if nk == 1:
        kernel = _make_matmul_kernel_single(apply_relu)
        grid = (Mp // tm, Np // tn)
        in_specs = [
            pl.BlockSpec((tm, tk), lambda i, j: (i, 0)),
            pl.BlockSpec((tk, tn), lambda i, j: (0, j)),
            pl.BlockSpec((1, tn), lambda i, j: (0, j)),
        ]
        out_specs = pl.BlockSpec((tm, tn), lambda i, j: (i, j))
        scratch = []
        sem = ("parallel", "parallel")
    else:
        kernel = _make_matmul_kernel_multi(apply_relu)
        grid = (Mp // tm, Np // tn, nk)
        in_specs = [
            pl.BlockSpec((tm, tk), lambda i, j, k: (i, k)),
            pl.BlockSpec((tk, tn), lambda i, j, k: (k, j)),
            pl.BlockSpec((1, tn), lambda i, j, k: (0, j)),
        ]
        out_specs = pl.BlockSpec((tm, tn), lambda i, j, k: (i, j))
        scratch = [pltpu.VMEM((tm, tn), jnp.float32)]
        sem = ("parallel", "parallel", "arbitrary")

    fn = pl.pallas_call(
        kernel,
        out_shape=jax.ShapeDtypeStruct((Mp, Np), out_dtype),
        grid_spec=pltpu.PrefetchScalarGridSpec(
            num_scalar_prefetch=0,
            grid=grid,
            in_specs=in_specs,
            out_specs=out_specs,
            scratch_shapes=scratch),
        compiler_params=pltpu.CompilerParams(
            dimension_semantics=sem,
            vmem_limit_bytes=_VMEM_LIMIT),
    )
    return jax.jit(fn)


def _fused_matmul(a, wp, bp, n_true, apply_relu, out_dtype=jnp.bfloat16):
    """a: (M, K) activations. wp: (Kp, Np) bf16 pre-padded weights (BN scale folded).
    bp: (1, Np) f32 shift. Returns (M, n_true) out_dtype."""
    M, K = a.shape
    Kp, Np = wp.shape
    # Row tile: full-extent (rounded to 16 for bf16 sublane packing) for small M --
    # deep layers (M=18, M=2) no longer pad up to 128/256 rows.
    if M <= 256:
        tm = Mp = _round_up(max(M, 1), 16)
    elif M <= 1024:
        tm = 128
        Mp = _round_up(M, 128)
    else:
        tm = 256
        Mp = _round_up(M, 256)
    tk = _pick_tile(Kp, _TK_MAX)
    tn = _pick_tile(Np, _TN_MAX)
    # Guarantee >=2 tiles on a parallel axis when the grid would be 1x1(xk),
    # so v7x's second TensorCore gets work (no-op on single-TC v5e/v6e).
    if Mp == tm and Np == tn and Np >= 256:
        tn = _pick_tile(Np, Np // 2)
    a = a.astype(jnp.bfloat16)
    if Mp != M or Kp != K:
        a = jnp.pad(a, ((0, Mp - M), (0, Kp - K)))
    out = _get_matmul_fn(Mp, Kp, Np, tm, tn, tk, bool(apply_relu),
                         jnp.dtype(out_dtype).name)(a, wp, bp)
    return out[:M, :n_true]


# --------------------------------------------------------------------------
# Pallas kernel 2: window reduction (max pool / avg pool), window axis leading
# --------------------------------------------------------------------------
def _make_pool_kernel(op, window):
    inv = 1.0 / float(window)

    def kernel(x_ref, o_ref):
        if op == "max":
            acc = x_ref[0]
            for t in range(1, window):
                acc = jnp.maximum(acc, x_ref[t])
            o_ref[...] = acc.astype(o_ref.dtype)
        else:
            acc = x_ref[0].astype(jnp.float32)
            for t in range(1, window):
                acc = acc + x_ref[t].astype(jnp.float32)
            o_ref[...] = (acc * inv).astype(o_ref.dtype)

    return kernel


@functools.lru_cache(maxsize=None)
def _get_pool_fn(Mp, window, Cp, tm, op, dtype_name):
    dtype = jnp.dtype(dtype_name)
    fn = pl.pallas_call(
        _make_pool_kernel(op, window),
        out_shape=jax.ShapeDtypeStruct((Mp, Cp), dtype),
        grid_spec=pltpu.PrefetchScalarGridSpec(
            num_scalar_prefetch=0,
            grid=(Mp // tm,),
            in_specs=[pl.BlockSpec((window, tm, Cp), lambda i: (0, i, 0))],
            out_specs=pl.BlockSpec((tm, Cp), lambda i: (i, 0)),
        ),
        compiler_params=pltpu.CompilerParams(
            dimension_semantics=("parallel",),
            vmem_limit_bytes=_VMEM_LIMIT),
    )
    return jax.jit(fn)


def _pool_reduce(patches, op):
    """patches: (window, M, C) -> (M, C) reduced over the leading window axis."""
    window, M, C = patches.shape
    Cp = _round_up(C, 128)
    if M <= 256:
        tm = Mp = _round_up(max(M, 1), 16)
        if Mp >= 32:                      # two row tiles so v7x's 2nd TC gets work
            tm = Mp // 2
    else:
        tm = 128
        Mp = _round_up(M, 128)
    if Mp != M or Cp != C:
        patches = jnp.pad(patches, ((0, 0), (0, Mp - M), (0, Cp - C)))
    out = _get_pool_fn(Mp, window, Cp, tm, op, patches.dtype.name)(patches)
    return out[:M, :C]


# --------------------------------------------------------------------------
# Glue: patch extraction (im2col), conv / pool wrappers
# --------------------------------------------------------------------------
def _extract_patches(x, kh, kw, sh, sw, ph, pw):
    """x: (N,H,W,C) NHWC -> (N, Ho, Wo, kh*kw, C) window patches (for im2col)."""
    if ph or pw:
        x = jnp.pad(x, ((0, 0), (ph, ph), (pw, pw), (0, 0)))
    N, H, W, C = x.shape
    Ho = (H - kh) // sh + 1
    Wo = (W - kw) // sw + 1
    cols = []
    for i in range(kh):
        for j in range(kw):
            cols.append(lax.slice(
                x, (0, i, j, 0),
                (N, i + (Ho - 1) * sh + 1, j + (Wo - 1) * sw + 1, C),
                (1, sh, sw, 1)))
    return jnp.stack(cols, axis=3), N, Ho, Wo


def _extract_pool_patches(x, kh, kw, sh, sw, ph, pw):
    """x: (N,H,W,C) -> (kh*kw, N*Ho*Wo, C): window axis leading (clean (8,128) loads)."""
    if ph or pw:
        x = jnp.pad(x, ((0, 0), (ph, ph), (pw, pw), (0, 0)))
    N, H, W, C = x.shape
    Ho = (H - kh) // sh + 1
    Wo = (W - kw) // sw + 1
    cols = []
    for i in range(kh):
        for j in range(kw):
            cols.append(lax.slice(
                x, (0, i, j, 0),
                (N, i + (Ho - 1) * sh + 1, j + (Wo - 1) * sw + 1, C),
                (1, sh, sw, 1)).reshape(N * Ho * Wo, C))
    return jnp.stack(cols, axis=0), N, Ho, Wo


def basic_conv2d(p, x, stride=(1, 1), padding=(0, 0)):
    """BasicConv2d: Conv2d(bias=False) + BatchNorm2d(eps=1e-3, eval) + ReLU."""
    kh, kw = p["ksize"]
    C = x.shape[-1]
    if kh == 1 and kw == 1 and stride == (1, 1) and padding == (0, 0):
        N, H, W, _ = x.shape
        Ho, Wo = H, W
        a = x.reshape(N * H * W, C)                     # 1x1 fast path: no im2col copy
    else:
        patches, N, Ho, Wo = _extract_patches(x, kh, kw, stride[0], stride[1],
                                              padding[0], padding[1])
        # weights are flattened (kh,kw,cin) at build time -> no transpose needed here
        a = patches.reshape(N * Ho * Wo, kh * kw * C)
    out = _fused_matmul(a, p["w"], p["shift"], p["cout"], True)
    return out.reshape(N, Ho, Wo, p["cout"])


def fused_1x1(p, x):
    """Several 1x1 BasicConv2d branches that read the same x, run as ONE matmul."""
    y = basic_conv2d(p, x)
    outs, off = [], 0
    for c in p["splits"]:
        outs.append(y[..., off:off + c])
        off += c
    return outs


def max_pool_3x3_s2(x):
    patches, N, Ho, Wo = _extract_pool_patches(x, 3, 3, 2, 2, 0, 0)
    C = x.shape[-1]
    out = _pool_reduce(patches, "max")
    return out.reshape(N, Ho, Wo, C)


def avg_pool_3x3_s1_p1(x):
    # F.avg_pool2d(k=3, s=1, p=1) with count_include_pad=True -> zero-pad, sum/9
    patches, N, Ho, Wo = _extract_pool_patches(x, 3, 3, 1, 1, 1, 1)
    C = x.shape[-1]
    out = _pool_reduce(patches, "avg")
    return out.reshape(N, Ho, Wo, C)


def global_avg_pool(x):
    # AdaptiveAvgPool2d((1,1)) + flatten -> (N, C)
    N, H, W, C = x.shape
    if H * W == 1:
        return x.reshape(N, C)            # free: no kernel launch needed
    pat = jnp.transpose(x.reshape(N, H * W, C), (1, 0, 2))
    return _pool_reduce(pat, "avg")


# --------------------------------------------------------------------------
# Deterministic parameter construction (synthetic weights, no checkpoint)
# --------------------------------------------------------------------------
def _conv_bn_np(rng, cin, cout, ksize):
    kh, kw = ksize if isinstance(ksize, tuple) else (ksize, ksize)
    K = cin * kh * kw
    w = rng.standard_normal((cout, cin, kh, kw)).astype(np.float32) * np.sqrt(2.0 / K)
    gamma = 1.0 + 0.1 * rng.standard_normal(cout).astype(np.float32)
    beta = 0.1 * rng.standard_normal(cout).astype(np.float32)
    rmean = 0.1 * rng.standard_normal(cout).astype(np.float32)
    rvar = 1.0 + 0.1 * np.abs(rng.standard_normal(cout)).astype(np.float32)
    scale = gamma / np.sqrt(rvar + BN_EPS)              # eval-mode BN folding
    shift = beta - rmean * scale
    # (K, cout) flattened in (kh, kw, cin) order to match the transpose-free im2col,
    # with the BN scale pre-multiplied into the weight columns.
    wmat = w.transpose(2, 3, 1, 0).reshape(K, cout) * scale[None, :]
    return {"wmat": wmat, "shift": shift, "cout": cout, "ksize": (kh, kw)}


def _finalize_conv(npp, splits=None):
    wmat, shift, cout = npp["wmat"], npp["shift"], npp["cout"]
    K = wmat.shape[0]
    Kp, Np = _round_up(K, 128), _round_up(cout, 128)
    wp = np.zeros((Kp, Np), np.float32)
    wp[:K, :cout] = wmat
    bp = np.zeros((1, Np), np.float32)
    bp[0, :cout] = shift
    out = {"w": jnp.asarray(wp, dtype=jnp.bfloat16),    # bf16 weights for the MXU
           "shift": jnp.asarray(bp), "cout": cout, "ksize": npp["ksize"]}
    if splits is not None:
        out["splits"] = tuple(int(c) for c in splits)
    return out


def _make_basic_conv_params(rng, cin, cout, ksize):
    return _finalize_conv(_conv_bn_np(rng, cin, cout, ksize))


def _make_fused_1x1_params(rng, cin, couts):
    branches = [_conv_bn_np(rng, cin, c, 1) for c in couts]
    wmat = np.concatenate([b["wmat"] for b in branches], axis=1)
    shift = np.concatenate([b["shift"] for b in branches], axis=0)
    return _finalize_conv({"wmat": wmat, "shift": shift,
                           "cout": int(sum(couts)), "ksize": (1, 1)}, splits=couts)


def _make_fc_params(rng, cin, cout):
    w = rng.standard_normal((cout, cin)).astype(np.float32) / np.sqrt(cin)
    b = 0.01 * rng.standard_normal(cout).astype(np.float32)
    Kp, Np = _round_up(cin, 128), _round_up(cout, 128)
    wp = np.zeros((Kp, Np), np.float32)
    wp[:cin, :cout] = w.T
    bp = np.zeros((1, Np), np.float32)
    bp[0, :cout] = b
    return {"w": jnp.asarray(wp, dtype=jnp.bfloat16), "shift": jnp.asarray(bp),
            "cout": cout, "ksize": (1, 1)}


def _make_inception_a(rng, cin, pool_features):
    m = _make_basic_conv_params
    return {"f1x1": _make_fused_1x1_params(rng, cin, (64, 48, 64)),   # b1, b5_1, b3d_1
            "b5_2": m(rng, 48, 64, 5),
            "b3d_2": m(rng, 64, 96, 3), "b3d_3": m(rng, 96, 96, 3),
            "bp": m(rng, cin, pool_features, 1)}


def _make_inception_b(rng, cin):
    m = _make_basic_conv_params
    return {"b3": m(rng, cin, 384, 3),
            "b3d_1": m(rng, cin, 64, 1), "b3d_2": m(rng, 64, 96, 3),
            "b3d_3": m(rng, 96, 96, 3)}


def _make_inception_c(rng, cin, c7):
    m = _make_basic_conv_params
    return {"f1x1": _make_fused_1x1_params(rng, cin, (192, c7, c7)),  # b1, b7_1, b7d_1
            "b7_2": m(rng, c7, c7, (1, 7)), "b7_3": m(rng, c7, 192, (7, 1)),
            "b7d_2": m(rng, c7, c7, (7, 1)), "b7d_3": m(rng, c7, c7, (1, 7)),
            "b7d_4": m(rng, c7, c7, (7, 1)), "b7d_5": m(rng, c7, 192, (1, 7)),
            "bp": m(rng, cin, 192, 1)}


def _make_inception_d(rng, cin):
    m = _make_basic_conv_params
    return {"f1x1": _make_fused_1x1_params(rng, cin, (192, 192)),     # b3_1, b7_1
            "b3_2": m(rng, 192, 320, 3),
            "b7_2": m(rng, 192, 192, (1, 7)), "b7_3": m(rng, 192, 192, (7, 1)),
            "b7_4": m(rng, 192, 192, 3)}


def _make_inception_e(rng, cin):
    m = _make_basic_conv_params
    return {"f1x1": _make_fused_1x1_params(rng, cin, (320, 384, 448)),  # b1, b3_1, b3d_1
            "b3_2a": m(rng, 384, 384, (1, 3)), "b3_2b": m(rng, 384, 384, (3, 1)),
            "b3d_2": m(rng, 448, 384, 3),
            "b3d_3a": m(rng, 384, 384, (1, 3)), "b3d_3b": m(rng, 384, 384, (3, 1)),
            "bp": m(rng, cin, 192, 1)}


def make_inception_v3_params(num_classes):
    rng = np.random.default_rng(0)
    m = _make_basic_conv_params
    p = {}
    p["Conv2d_1a_3x3"] = m(rng, 1, 32, 3)        # replaced stem: Conv2d(1, 32, k=3, stride=1)
    p["Conv2d_2a_3x3"] = m(rng, 32, 32, 3)
    p["Conv2d_2b_3x3"] = m(rng, 32, 64, 3)
    p["Conv2d_3b_1x1"] = m(rng, 64, 80, 1)
    p["Conv2d_4a_3x3"] = m(rng, 80, 192, 3)
    p["Mixed_5b"] = _make_inception_a(rng, 192, 32)
    p["Mixed_5c"] = _make_inception_a(rng, 256, 64)
    p["Mixed_5d"] = _make_inception_a(rng, 288, 64)
    p["Mixed_6a"] = _make_inception_b(rng, 288)
    p["Mixed_6b"] = _make_inception_c(rng, 768, 128)
    p["Mixed_6c"] = _make_inception_c(rng, 768, 160)
    p["Mixed_6d"] = _make_inception_c(rng, 768, 160)
    p["Mixed_6e"] = _make_inception_c(rng, 768, 192)
    p["Mixed_7a"] = _make_inception_d(rng, 768)
    p["Mixed_7b"] = _make_inception_e(rng, 1280)
    p["Mixed_7c"] = _make_inception_e(rng, 2048)
    p["fc"] = _make_fc_params(rng, 2048, num_classes)
    return p


# --------------------------------------------------------------------------
# Inception blocks (forward)
# --------------------------------------------------------------------------
def inception_a(p, x):
    b1, b5, b3 = fused_1x1(p["f1x1"], x)
    b5 = basic_conv2d(p["b5_2"], b5, padding=(2, 2))
    b3 = basic_conv2d(p["b3d_2"], b3, padding=(1, 1))
    b3 = basic_conv2d(p["b3d_3"], b3, padding=(1, 1))
    bp = basic_conv2d(p["bp"], avg_pool_3x3_s1_p1(x))
    return jnp.concatenate([b1, b5, b3, bp], axis=-1)


def inception_b(p, x):
    b3 = basic_conv2d(p["b3"], x, stride=(2, 2))
    b3d = basic_conv2d(p["b3d_1"], x)
    b3d = basic_conv2d(p["b3d_2"], b3d, padding=(1, 1))
    b3d = basic_conv2d(p["b3d_3"], b3d, stride=(2, 2))
    bp = max_pool_3x3_s2(x)
    return jnp.concatenate([b3, b3d, bp], axis=-1)


def inception_c(p, x):
    b1, b7, b7d = fused_1x1(p["f1x1"], x)
    b7 = basic_conv2d(p["b7_2"], b7, padding=(0, 3))
    b7 = basic_conv2d(p["b7_3"], b7, padding=(3, 0))
    b7d = basic_conv2d(p["b7d_2"], b7d, padding=(3, 0))
    b7d = basic_conv2d(p["b7d_3"], b7d, padding=(0, 3))
    b7d = basic_conv2d(p["b7d_4"], b7d, padding=(3, 0))
    b7d = basic_conv2d(p["b7d_5"], b7d, padding=(0, 3))
    bp = basic_conv2d(p["bp"], avg_pool_3x3_s1_p1(x))
    return jnp.concatenate([b1, b7, b7d, bp], axis=-1)


def inception_d(p, x):
    b3, b7 = fused_1x1(p["f1x1"], x)
    b3 = basic_conv2d(p["b3_2"], b3, stride=(2, 2))
    b7 = basic_conv2d(p["b7_2"], b7, padding=(0, 3))
    b7 = basic_conv2d(p["b7_3"], b7, padding=(3, 0))
    b7 = basic_conv2d(p["b7_4"], b7, stride=(2, 2))
    bp = max_pool_3x3_s2(x)
    return jnp.concatenate([b3, b7, bp], axis=-1)


def inception_e(p, x):
    b1, b3, b3d = fused_1x1(p["f1x1"], x)
    b3 = jnp.concatenate([basic_conv2d(p["b3_2a"], b3, padding=(0, 1)),
                          basic_conv2d(p["b3_2b"], b3, padding=(1, 0))], axis=-1)
    b3d = basic_conv2d(p["b3d_2"], b3d, padding=(1, 1))
    b3d = jnp.concatenate([basic_conv2d(p["b3d_3a"], b3d, padding=(0, 1)),
                           basic_conv2d(p["b3d_3b"], b3d, padding=(1, 0))], axis=-1)
    bp = basic_conv2d(p["bp"], avg_pool_3x3_s1_p1(x))
    return jnp.concatenate([b1, b3, b3d, bp], axis=-1)


def inception_model_forward(p, img_nchw):
    """InceptionModel.forward — input NCHW (N, 1, H, W) -> logits (N, num_classes)."""
    x = jnp.transpose(img_nchw, (0, 2, 3, 1)).astype(jnp.bfloat16)   # NCHW -> NHWC, bf16
    x = basic_conv2d(p["Conv2d_1a_3x3"], x)                          # replaced stem, stride 1
    x = basic_conv2d(p["Conv2d_2a_3x3"], x)
    x = basic_conv2d(p["Conv2d_2b_3x3"], x, padding=(1, 1))
    x = max_pool_3x3_s2(x)                                           # maxpool1
    x = basic_conv2d(p["Conv2d_3b_1x1"], x)
    x = basic_conv2d(p["Conv2d_4a_3x3"], x)
    x = max_pool_3x3_s2(x)                                           # maxpool2
    x = inception_a(p["Mixed_5b"], x)
    x = inception_a(p["Mixed_5c"], x)
    x = inception_a(p["Mixed_5d"], x)
    x = inception_b(p["Mixed_6a"], x)
    x = inception_c(p["Mixed_6b"], x)
    x = inception_c(p["Mixed_6c"], x)
    x = inception_c(p["Mixed_6d"], x)
    x = inception_c(p["Mixed_6e"], x)
    x = inception_d(p["Mixed_7a"], x)
    x = inception_e(p["Mixed_7b"], x)
    x = inception_e(p["Mixed_7c"], x)
    feat = global_avg_pool(x)                                        # (N, 2048)
    # dropout -> identity (eval mode); fc: feat @ W.T + b (shift=bias, no relu), f32 logits
    logits = _fused_matmul(feat, p["fc"]["w"], p["fc"]["shift"],
                           p["fc"]["cout"], apply_relu=False, out_dtype=jnp.float32)
    return logits


if __name__ == "__main__":
    params = make_inception_v3_params(NUM_CLASSES)
    # Smallest spatial size that survives the (stride-1 stem) Inception-v3 downsampling chain
    # is 39x39; single grayscale channel per the replaced first conv.
    img = jax.random.normal(jax.random.PRNGKey(0), (2, 1, 39, 39), dtype=jnp.float32)
    logits = inception_model_forward(params, img)
    logits = jax.block_until_ready(logits)
    assert logits.shape == (2, NUM_CLASSES), logits.shape
    assert bool(jnp.all(jnp.isfinite(logits)))
    print("KERNEL_OK")
</pallas_src>

<mosaic_0001>
module attributes {stable_mosaic.version = 11 : i64} {
  func.func @kernel(%arg0: i32, %arg1: i32, %arg2: memref<256x128xbf16, #tpu.memory_space<vmem>>, %arg3: memref<128x128xbf16, #tpu.memory_space<vmem>>, %arg4: memref<1x128xf32, #tpu.memory_space<vmem>>, %arg5: memref<256x128xbf16, #tpu.memory_space<vmem>>) attributes {dimension_semantics = [#tpu.dimension_semantics<parallel>, #tpu.dimension_semantics<parallel>], iteration_bounds = array<i64: 11, 1>, scalar_prefetch = 0 : i64, scratch_operands = 0 : i64, tpu.core_type = #tpu.core_type<tc>, window_params = [{transform_indices = @transform_0, window_bounds = array<i64: 256, 128>}, {transform_indices = @transform_1, window_bounds = array<i64: 128, 128>}, {transform_indices = @transform_2, window_bounds = array<i64: 1, 128>}, {transform_indices = @transform_3, window_bounds = array<i64: 256, 128>}]} {
    %c0 = arith.constant 0 : index
    %c0_0 = arith.constant 0 : index
    %0 = vector.load %arg2[%c0, %c0_0] : memref<256x128xbf16, #tpu.memory_space<vmem>>, vector<256x128xbf16>
    %c0_1 = arith.constant 0 : index
    %c0_2 = arith.constant 0 : index
    %1 = vector.load %arg3[%c0_1, %c0_2] : memref<128x128xbf16, #tpu.memory_space<vmem>>, vector<128x128xbf16>
    %cst = arith.constant dense<0.000000e+00> : vector<256x128xf32>
    %2 = tpu.matmul %0, %1, %cst {dimension_numbers = #tpu.dot_dimension_numbers<[1], [0], [0], [1], [0, 0, 1, 1], [], []>} : vector<256x128xbf16>, vector<128x128xbf16>, vector<256x128xf32> -> vector<256x128xf32>
    %c0_3 = arith.constant 0 : index
    %c0_4 = arith.constant 0 : index
    %3 = vector.load %arg4[%c0_3, %c0_4] : memref<1x128xf32, #tpu.memory_space<vmem>>, vector<1x128xf32>
    %4 = vector.broadcast %3 : vector<1x128xf32> to vector<256x128xf32>
    %5 = arith.addf %2, %4 : vector<256x128xf32>
    %cst_5 = arith.constant 0.000000e+00 : f32
    %6 = vector.broadcast %cst_5 : f32 to vector<256x128xf32>
    %7 = arith.maximumf %5, %6 : vector<256x128xf32>
    %8 = arith.truncf %7 : vector<256x128xf32> to vector<256x128xbf16>
    %c0_6 = arith.constant 0 : index
    %c0_7 = arith.constant 0 : index
    %9 = vector.load %arg5[%c0_6, %c0_7] : memref<256x128xbf16, #tpu.memory_space<vmem>>, vector<256x128xbf16>
    tpu.vector_store %arg5[%c0_6, %c0_7], %8 {strides = array<i32>} : memref<256x128xbf16, #tpu.memory_space<vmem>>, vector<256x128xbf16>,
    return
  }
  func.func @transform_0(%arg0: i32, %arg1: i32) -> (i32, i32) {
    %c0_i32 = arith.constant 0 : i32
    %c0_i32_0 = arith.constant 0 : i32
    return %arg0, %c0_i32 : i32, i32
  }
  func.func @transform_1(%arg0: i32, %arg1: i32) -> (i32, i32) {
    %c0_i32 = arith.constant 0 : i32
    %c0_i32_0 = arith.constant 0 : i32
    return %c0_i32, %arg1 : i32, i32
  }
  func.func @transform_2(%arg0: i32, %arg1: i32) -> (i32, i32) {
    %c0_i32 = arith.constant 0 : i32
    %c0_i32_0 = arith.constant 0 : i32
    return %c0_i32, %arg1 : i32, i32
  }
  func.func @transform_3(%arg0: i32, %arg1: i32) -> (i32, i32) {
    %c0_i32 = arith.constant 0 : i32
    return %arg0, %arg1 : i32, i32
  }
}

</mosaic_0001>

<llo_original>
// kernel: tpu_custom_call.1
$region0: #{tpu_custom_call.1}
  #allocation0 [shape = 'u32[]', space=smem, size = 0x4, offset = 0x4, fixed_abs, tag = 'smem constant byte address 0x4 - core index']
  #allocation1 [shape = 'u32[144,128]{1,0:T(1,128)}', space=vmem, size = 0x12000, scoped, tag = 'internal scratch']
  %s0 = inlined_call_operand.hbm [shape: bf16[2816,128], index: 0, kind: input, shape index: {}]
  %s1 = inlined_call_operand.hbm [shape: bf16[128,128], index: 1, kind: input, shape index: {}]
  %s2 = inlined_call_operand.vmem [shape: f32[1,128], index: 2, kind: input, shape index: {}]
  %s3 = inlined_call_operand.hbm [shape: bf16[2816,128], index: 3, kind: output, shape index: {}]
  %s4 = sld [smem:[#allocation0]]
  $region53: #{tpu_custom_call.1} parent=0
    _
  %s6 = ssub.s32 1, %s4
  %s7 = scalar_select 0, %s6, %s4
  $region1: #{tpu_custom_call.1} parent=0
    #allocation2 [shape = 'u8[131072]{0}', space=vmem, size = 0x20000, scoped, tag = 'input window, operand 0']
    #allocation3 [shape = 's32[2]{0}', space=sflag, size = 0x8, scoped, tag = 'scoped memory for tpu_custom_call.1']
    #allocation4 [shape = 's32[2]{0}', space=sflag, size = 0x8, scoped, tag = 'scoped memory for tpu_custom_call.1']
    #allocation5 [shape = 'u8[32768]{0}', space=vmem, size = 0x8000, scoped, tag = 'input window, operand 1, single buffered']
    #allocation6 [shape = 's32[1]{0}', space=sflag, size = 0x4, scoped, tag = 'scoped memory for tpu_custom_call.1']
    #allocation7 [shape = 'u8[131072]{0}', space=vmem, size = 0x20000, scoped, tag = 'output window, operand 0']
    %8 = vsyncpa [#allocation3], 0
    %s9 = scalar_lea.sflag [#allocation3], 1
    %10 = vsyncpa %s9, 0
    %11 = vsyncpa [#allocation6], 0
    %12 = vsyncpa [#allocation4], 0
    %s13 = scalar_lea.sflag [#allocation4], 1
    %14 = vsyncpa %s13, 0
    loop: start=0, step=1, limit=13
    $region2: #{tpu_custom_call.1} parent=1 // loop_pre_header
      _
    $region3: #{tpu_custom_call.1} parent=1 // loop_header
      %s16 = sphi 0, %s20
      %p17 = scmp.ge.s32.totalorder %s16, 13
      %s23 = sphi 0, %s35
      %s24 = sphi 0, %s31
      %s25 = sphi 0, %s23
      %s26 = sphi 0, %s24
      %s27 = sphi 0, %s25
      %s28 = sphi 0, %s26
      %s38 = sphi 0, %s40
      %s41 = sphi 0, %s38
      %s42 = sphi 0, %s41
      %s58 = sphi 0, %s42
      %s64 = sphi 0, %s66
      %s67 = sphi 0, %s64
      %s68 = sphi 0, %s67
      %s84 = sphi 0, %s68
      %s90 = sphi 0, %s92
      %s93 = sphi 0, %s90
      %s94 = sphi 0, %s93
      %s110 = sphi 0, %s94
      %s118 = sphi 0, %s120
      %s121 = sphi 0, %s118
      %s122 = sphi 0, %s121
      %s138 = sphi 0, %s122
    $region4: #{tpu_custom_call.1} parent=1 // loop_header_branch
      %19 = sbr.rel (%p17) target = $region8
    $region5: #{tpu_custom_call.1} parent=1 // loop_body
      %s21 = ssub.s32 %s16, 1
      %s22 = ssub.s32 %s16, 2
      %s29 = sadd.s32 1, %s24
      %p30 = scmp.ge.s32.totalorder %s29, 1
      %s31 = scalar_select %p30, 0, %s29
      %s32 = sadd.s32 1, %s23
      %s33 = scalar_select %p30, %s32, %s23
      %p34 = scmp.ge.s32.totalorder %s33, 11
      %s35 = scalar_select %p34, 0, %s33
      %s36 = ssub.s32 %s23, %s35
      %p37 = scmp.eq.s32.totalorder %s36, 0
      %s39 = sadd.s32 %s38, 1
      %s40 = scalar_select %p37, %s38, %s39
      %p43 = pneg %p37
      %p44 = scmp.eq.s32.totalorder %s16, 10
      %p45 = por %p43, %p44
      %p46 = scmp.ne.s32.totalorder %s38, %s41
      %p47 = scmp.eq.s32.totalorder %s16, 0
      %p48 = por %p46, %p47
      %p49 = scmp.ne.s32.totalorder %s38, %s41
      %p50 = scmp.eq.s32.totalorder %s21, 10
      %p51 = por %p49, %p50
      %p52 = scmp.ne.s32.totalorder %s41, %s42
      %p53 = scmp.eq.s32.totalorder %s21, 0
      %p54 = por %p52, %p53
      %p55 = scmp.ne.s32.totalorder %s41, %s42
      %p56 = scmp.eq.s32.totalorder %s22, 10
      %p57 = por %p55, %p56
      %p59 = scmp.ne.s32.totalorder %s42, %s58
      %p60 = scmp.eq.s32.totalorder %s22, 0
      %p61 = por %p59, %p60
      %s62 = ssub.s32 %s24, %s31
      %p63 = scmp.eq.s32.totalorder %s62, 0
      %s65 = sadd.s32 %s64, 1
      %s66 = scalar_select %p63, %s64, %s65
      %p69 = pneg %p63
      %p70 = scmp.eq.s32.totalorder %s16, 10
      %p71 = por %p69, %p70
      %p72 = scmp.ne.s32.totalorder %s64, %s67
      %p73 = scmp.eq.s32.totalorder %s16, 0
      %p74 = por %p72, %p73
      %p75 = scmp.ne.s32.totalorder %s64, %s67
      %p76 = scmp.eq.s32.totalorder %s21, 10
      %p77 = por %p75, %p76
      %p78 = scmp.ne.s32.totalorder %s67, %s68
      %p79 = scmp.eq.s32.totalorder %s21, 0
      %p80 = por %p78, %p79
      %p81 = scmp.ne.s32.totalorder %s67, %s68
      %p82 = scmp.eq.s32.totalorder %s22, 10
      %p83 = por %p81, %p82
      %p85 = scmp.ne.s32.totalorder %s68, %s84
      %p86 = scmp.eq.s32.totalorder %s22, 0
      %p87 = por %p85, %p86
      %s88 = ssub.s32 %s24, %s31
      %p89 = scmp.eq.s32.totalorder %s88, 0
      %s91 = sadd.s32 %s90, 1
      %s92 = scalar_select %p89, %s90, %s91
      %p95 = pneg %p89
      %p96 = scmp.eq.s32.totalorder %s16, 10
      %p97 = por %p95, %p96
      %p98 = scmp.ne.s32.totalorder %s90, %s93
      %p99 = scmp.eq.s32.totalorder %s16, 0
      %p100 = por %p98, %p99
      %p101 = scmp.ne.s32.totalorder %s90, %s93
      %p102 = scmp.eq.s32.totalorder %s21, 10
      %p103 = por %p101, %p102
      %p104 = scmp.ne.s32.totalorder %s93, %s94
      %p105 = scmp.eq.s32.totalorder %s21, 0
      %p106 = por %p104, %p105
      %p107 = scmp.ne.s32.totalorder %s93, %s94
      %p108 = scmp.eq.s32.totalorder %s22, 10
      %p109 = por %p107, %p108
      %p111 = scmp.ne.s32.totalorder %s94, %s110
      %p112 = scmp.eq.s32.totalorder %s22, 0
      %p113 = por %p111, %p112
      %s114 = ssub.s32 %s23, %s35
      %s115 = ssub.s32 %s24, %s31
      %s116 = sor.u32 %s114, %s115
      %p117 = scmp.eq.s32.totalorder %s116, 0
      %s119 = sadd.s32 %s118, 1
      %s120 = scalar_select %p117, %s118, %s119
      %p123 = pneg %p117
      %p124 = scmp.eq.s32.totalorder %s16, 10
      %p125 = por %p123, %p124
      %p126 = scmp.ne.s32.totalorder %s118, %s121
      %p127 = scmp.eq.s32.totalorder %s16, 0
      %p128 = por %p126, %p127
      %p129 = scmp.ne.s32.totalorder %s118, %s121
      %p130 = scmp.eq.s32.totalorder %s21, 10
      %p131 = por %p129, %p130
      %p132 = scmp.ne.s32.totalorder %s121, %s122
      %p133 = scmp.eq.s32.totalorder %s21, 0
      %p134 = por %p132, %p133
      %p135 = scmp.ne.s32.totalorder %s121, %s122
      %p136 = scmp.eq.s32.totalorder %s22, 10
      %p137 = por %p135, %p136
      %p139 = scmp.ne.s32.totalorder %s122, %s138
      %p140 = scmp.eq.s32.totalorder %s22, 0
      %p141 = por %p139, %p140
      %p142 = scmp.le.s32.totalorder 1, %s16
      %p143 = scmp.lt.s32.totalorder %s16, 12
      %p144 = pnand %p142, %p143
      %p145 = pneg %p144
      // Predicated region
      $region9: #{tpu_custom_call.1} parent=5 // pred_check
        _
      $region10: #{tpu_custom_call.1} parent=5 // pred_check_branch
        %147 = sbr.rel (%p144) target = $region12
      $region11: #{tpu_custom_call.1} parent=5 // pred_region
        %s148 = ssub.s32 %s16, 1
        // Predicated region
        $region13: #{tpu_custom_call.1} parent=11 // pred_check
          %p149 = pneg %p80
        $region14: #{tpu_custom_call.1} parent=11 // pred_check_branch
          %151 = sbr.rel (%p149) target = $region16
        $region15: #{tpu_custom_call.1} parent=11 // pred_region
          %s153 = ssub.s32 1024, 1024
          %154 = vsyncadd [#allocation6], %s153
          %s155 = smul.addr %s26, 64
          %s156 = scalar_lea.hbm %s1, %s155
          %s157 = sshll.u32 [#allocation5], 4
          %s158 = int_to_ptr.vmem [resolvable:$true] %s157
          %163 = dma.hbm_to_vmem [thread:$0]  %s156, 1024, %s158, [#allocation6], 64, 64, 4
        $region16: #{tpu_custom_call.1} parent=11 // pred_fallthru
          _
        // Predicated region
        $region17: #{tpu_custom_call.1} parent=11 // pred_check
          %p164 = pneg %p106
        $region18: #{tpu_custom_call.1} parent=11 // pred_check_branch
          %166 = sbr.rel (%p164) target = $region20
        $region19: #{tpu_custom_call.1} parent=11 // pred_region
          %p167 = scmp.lt.s32.totalorder %s26, 0
          %s168 = scalar_select %p167, %s26, 0
          %s169 = scalar_lea.vmem %s2, %s168
        $region20: #{tpu_custom_call.1} parent=11 // pred_fallthru
          _
      $region12: #{tpu_custom_call.1} parent=5 // pred_fallthru
        _
      %p170 = scmp.lt.s32.totalorder %s16, 11
      // Predicated region
      $region21: #{tpu_custom_call.1} parent=5 // pred_check
        %p171 = pneg %p170
      $region22: #{tpu_custom_call.1} parent=5 // pred_check_branch
        %173 = sbr.rel (%p171) target = $region24
      $region23: #{tpu_custom_call.1} parent=5 // pred_region
        // Predicated region
        $region25: #{tpu_custom_call.1} parent=23 // pred_check
          %p174 = pneg %p48
        $region26: #{tpu_custom_call.1} parent=23 // pred_check_branch
          %176 = sbr.rel (%p174) target = $region28
        $region27: #{tpu_custom_call.1} parent=23 // pred_region
          %s177 = sand.u32 %s38, 1
          %s178 = scalar_lea.sflag [#allocation3], %s177
          %s179 = sand.u32 %s38, 1
          %s180 = smul.addr %s179, 128
          %s181 = scalar_lea.vmem [#allocation2], %s180
          %s182 = smul.u32 32, %s23
          %s184 = ssub.s32 2048, 2048
          %185 = vsyncadd %s178, %s184
          %s186 = smul.addr %s182, 64
          %s187 = scalar_lea.hbm %s0, %s186
          %s188 = sshll.u32 %s181, 4
          %s189 = int_to_ptr.vmem [resolvable:$true] %s188
          %194 = dma.hbm_to_vmem [thread:$0]  %s187, 2048, %s189, %s178, 64, 64, 4
        $region28: #{tpu_custom_call.1} parent=23 // pred_fallthru
          _
      $region24: #{tpu_custom_call.1} parent=5 // pred_fallthru
        _
      %p195 = scmp.le.s32.totalorder 1, %s16
      %p196 = scmp.lt.s32.totalorder %s16, 12
      %p197 = pnand %p195, %p196
      %p198 = pneg %p197
      // Predicated region
      $region29: #{tpu_custom_call.1} parent=5 // pred_check
        _
      $region30: #{tpu_custom_call.1} parent=5 // pred_check_branch
        %200 = sbr.rel (%p197) target = $region32
      $region31: #{tpu_custom_call.1} parent=5 // pred_region
        %s201 = ssub.s32 %s16, 1
        %s202 = sand.u32 %s41, 1
        %s203 = scalar_lea.sflag [#allocation3], %s202
        %s204 = sand.u32 %s41, 1
        %s205 = smul.addr %s204, 128
        %s206 = scalar_lea.vmem [#allocation2], %s205
        // Predicated region
        $region33: #{tpu_custom_call.1} parent=31 // pred_check
          %p207 = pneg %p54
        $region34: #{tpu_custom_call.1} parent=31 // pred_check_branch
          %209 = sbr.rel (%p207) target = $region36
        $region35: #{tpu_custom_call.1} parent=31 // pred_region
          %210 = dma.done %s203, 2048
        $region36: #{tpu_custom_call.1} parent=31 // pred_fallthru
          _
        // Predicated region
        $region37: #{tpu_custom_call.1} parent=31 // pred_check
          %p211 = pneg %p80
        $region38: #{tpu_custom_call.1} parent=31 // pred_check_branch
          %213 = sbr.rel (%p211) target = $region40
        $region39: #{tpu_custom_call.1} parent=31 // pred_region
          %214 = dma.done [#allocation6], 1024
        $region40: #{tpu_custom_call.1} parent=31 // pred_fallthru
          _
        %s215 = sand.u32 %s41, 1
        %s216 = scalar_lea.sflag [#allocation3], %s215
        %s217 = sand.u32 %s41, 1
        %s218 = smul.addr %s217, 128
        %s219 = scalar_lea.vmem [#allocation2], %s218
        %p220 = pneg %p54
        %p221 = pneg %p51
        %p222 = pneg %p80
        %p223 = pneg %p77
        %p224 = scmp.lt.s32.totalorder %s26, 0
        %s225 = scalar_select %p224, %s26, 0
        %s226 = scalar_lea.vmem %s2, %s225
        %p227 = pneg %p106
        %p228 = pneg %p103
        %p229 = pneg %p134
        %p230 = pneg %p131
        %s231 = sand.u32 %s121, 1
        %s232 = scalar_lea.sflag [#allocation4], %s231
        %s233 = sand.u32 %s121, 1
        %s234 = smul.addr %s233, 128
        %s235 = scalar_lea.vmem [#allocation7], %s234
        %s236 = smul.u32 32, %s25
        %p237 = scmp.lt.s32.totalorder %s26, 0
        %s238 = scalar_select %p237, %s26, 0
        %s239 = scalar_lea.vmem %s2, %s238
        %s240 = smul.u32 32, %s25
        %v242 = vld [vmem:[%s206] sm:$0xf]
        %v243 = vld [vmem:[%s206 + $0x4] sm:$0xf]
        %v244 = vld [vmem:[%s206 + $0x8] sm:$0xf]
        %v245 = vld [vmem:[%s206 + $0xc] sm:$0xf]
        %v246 = vld [vmem:[%s206 + $0x10] sm:$0xf]
        %v247 = vld [vmem:[%s206 + $0x14] sm:$0xf]
        %v248 = vld [vmem:[%s206 + $0x18] sm:$0xf]
        %v249 = vld [vmem:[%s206 + $0x1c] sm:$0xf]
        %v250 = vld [vmem:[%s206 + $0x20] sm:$0xf]
        %v251 = vld [vmem:[%s206 + $0x24] sm:$0xf]
        %v252 = vld [vmem:[%s206 + $0x28] sm:$0xf]
        %v253 = vld [vmem:[%s206 + $0x2c] sm:$0xf]
        %v254 = vld [vmem:[%s206 + $0x30] sm:$0xf]
        %v255 = vld [vmem:[%s206 + $0x34] sm:$0xf]
        %v256 = vld [vmem:[%s206 + $0x38] sm:$0xf]
        %v257 = vld [vmem:[%s206 + $0x3c] sm:$0xf]
        %v258 = vld [vmem:[%s206 + $0x40] sm:$0xf]
        %v259 = vld [vmem:[%s206 + $0x44] sm:$0xf]
        %v260 = vld [vmem:[%s206 + $0x48] sm:$0xf]
        %v261 = vld [vmem:[%s206 + $0x4c] sm:$0xf]
        %v262 = vld [vmem:[%s206 + $0x50] sm:$0xf]
        %v263 = vld [vmem:[%s206 + $0x54] sm:$0xf]
        %v264 = vld [vmem:[%s206 + $0x58] sm:$0xf]
        %v265 = vld [vmem:[%s206 + $0x5c] sm:$0xf]
        %v266 = vld [vmem:[%s206 + $0x60] sm:$0xf]
        %v267 = vld [vmem:[%s206 + $0x64] sm:$0xf]
        %v268 = vld [vmem:[%s206 + $0x68] sm:$0xf]
        %v269 = vld [vmem:[%s206 + $0x6c] sm:$0xf]
        %v270 = vld [vmem:[%s206 + $0x70] sm:$0xf]
        %v271 = vld [vmem:[%s206 + $0x74] sm:$0xf]
        %v272 = vld [vmem:[%s206 + $0x78] sm:$0xf]
        %v273 = vld [vmem:[%s206 + $0x7c] sm:$0xf]
        %v274 = vld [vmem:[#allocation5] sm:$0xf]
        %v275 = vld [vmem:[#allocation5 + $0x4] sm:$0xf]
        %v276 = vld [vmem:[#allocation5 + $0x8] sm:$0xf]
        %v277 = vld [vmem:[#allocation5 + $0xc] sm:$0xf]
        %v278 = vld [vmem:[#allocation5 + $0x10] sm:$0xf]
        %v279 = vld [vmem:[#allocation5 + $0x14] sm:$0xf]
        %v280 = vld [vmem:[#allocation5 + $0x18] sm:$0xf]
        %v281 = vld [vmem:[#allocation5 + $0x1c] sm:$0xf]
        %v282 = vld [vmem:[#allocation5 + $0x20] sm:$0xf]
        %v283 = vld [vmem:[#allocation5 + $0x24] sm:$0xf]
        %v284 = vld [vmem:[#allocation5 + $0x28] sm:$0xf]
        %v285 = vld [vmem:[#allocation5 + $0x2c] sm:$0xf]
        %v286 = vld [vmem:[#allocation5 + $0x30] sm:$0xf]
        %v287 = vld [vmem:[#allocation5 + $0x34] sm:$0xf]
        %v288 = vld [vmem:[#allocation5 + $0x38] sm:$0xf]
        %v289 = vld [vmem:[#allocation5 + $0x3c] sm:$0xf]
        %v290 = vld [vmem:[%s239] sm:$0x1]
        %v292 = vlaneseq
        %v293 = vshrl.u32 %v292, 7
        %v294 = vsub.s32 0, %v293
        %v295 = vrot.slane %v290, %v294
        %v329 = vunpack.c.l.b16 %v242
        %v330 = vunpack.c.l.b16 %v243
        %v331 = vunpack.c.l.b16 %v244
        %v332 = vunpack.c.l.b16 %v245
        %v333 = vunpack.c.l.b16 %v246
        %v334 = vunpack.c.l.b16 %v247
        %v335 = vunpack.c.l.b16 %v248
        %v336 = vunpack.c.l.b16 %v249
        %v337 = vunpack.c.l.b16 %v250
        %v338 = vunpack.c.l.b16 %v251
        %v339 = vunpack.c.l.b16 %v252
        %v340 = vunpack.c.l.b16 %v253
        %v341 = vunpack.c.l.b16 %v254
        %v342 = vunpack.c.l.b16 %v255
        %v343 = vunpack.c.l.b16 %v256
        %v344 = vunpack.c.l.b16 %v257
        %v345 = vunpack.c.l.b16 %v258
        %v346 = vunpack.c.l.b16 %v259
        %v347 = vunpack.c.l.b16 %v260
        %v348 = vunpack.c.l.b16 %v261
        %v349 = vunpack.c.l.b16 %v262
        %v350 = vunpack.c.l.b16 %v263
        %v351 = vunpack.c.l.b16 %v264
        %v352 = vunpack.c.l.b16 %v265
        %v353 = vunpack.c.l.b16 %v266
        %v354 = vunpack.c.l.b16 %v267
        %v355 = vunpack.c.l.b16 %v268
        %v356 = vunpack.c.l.b16 %v269
        %v357 = vunpack.c.l.b16 %v270
        %v358 = vunpack.c.l.b16 %v271
        %v359 = vunpack.c.l.b16 %v272
        %v360 = vunpack.c.l.b16 %v273
        %v361 = vpack.c.b16 %v330, %v329
        %v362 = vpack.c.b16 %v332, %v331
        %v363 = vpack.c.b16 %v334, %v333
        %v364 = vpack.c.b16 %v336, %v335
        %v365 = vpack.c.b16 %v338, %v337
        %v366 = vpack.c.b16 %v340, %v339
        %v367 = vpack.c.b16 %v342, %v341
        %v368 = vpack.c.b16 %v344, %v343
        %v369 = vpack.c.b16 %v346, %v345
        %v370 = vpack.c.b16 %v348, %v347
        %v371 = vpack.c.b16 %v350, %v349
        %v372 = vpack.c.b16 %v352, %v351
        %v373 = vpack.c.b16 %v354, %v353
        %v374 = vpack.c.b16 %v356, %v355
        %v375 = vpack.c.b16 %v358, %v357
        %v376 = vpack.c.b16 %v360, %v359
        %v409 = vunpack.c.l.b16 %v274
        %v410 = vunpack.c.l.b16 %v275
        %v411 = vunpack.c.l.b16 %v276
        %v412 = vunpack.c.l.b16 %v277
        %v413 = vunpack.c.l.b16 %v278
        %v414 = vunpack.c.l.b16 %v279
        %v415 = vunpack.c.l.b16 %v280
        %v416 = vunpack.c.l.b16 %v281
        %v417 = vunpack.c.l.b16 %v282
        %v418 = vunpack.c.l.b16 %v283
        %v419 = vunpack.c.l.b16 %v284
        %v420 = vunpack.c.l.b16 %v285
        %v421 = vunpack.c.l.b16 %v286
        %v422 = vunpack.c.l.b16 %v287
        %v423 = vunpack.c.l.b16 %v288
        %v424 = vunpack.c.l.b16 %v289
        %v425 = vpack.c.b16 %v410, %v409
        %v426 = vpack.c.b16 %v412, %v411
        %v427 = vpack.c.b16 %v414, %v413
        %v428 = vpack.c.b16 %v416, %v415
        %v429 = vpack.c.b16 %v418, %v417
        %v430 = vpack.c.b16 %v420, %v419
        %v431 = vpack.c.b16 %v422, %v421
        %v432 = vpack.c.b16 %v424, %v423
        %441 = vmatprep.subr.bf16.mxu0 0
        %442 = vmatpush1.bf16.msra.mxu0 %v425
        %443 = vmatprep.subr.bf16.mxu0 0
        %444 = vmatpush1.bf16.msra.mxu0 %v426
        %445 = vmatprep.subr.bf16.mxu0 0
        %446 = vmatpush1.bf16.msra.mxu0 %v427
        %447 = vmatprep.subr.bf16.mxu0 0
        %448 = vmatpush1.bf16.msra.mxu0 %v428
        %449 = vmatprep.subr.bf16.mxu0 0
        %450 = vmatpush1.bf16.msra.mxu0 %v429
        %451 = vmatprep.subr.bf16.mxu0 0
        %452 = vmatpush1.bf16.msra.mxu0 %v430
        %453 = vmatprep.subr.bf16.mxu0 0
        %454 = vmatpush1.bf16.msra.mxu0 %v431
        %455 = vmatprep.subr.bf16.mxu0 0
        %456 = vmatpush1.bf16.msra.mxu0 %v432
        %457 = vmatprep.subr.bf16.mxu0 0
        %458 = vmatpush1.bf16.msra.mxu0 0
        %459 = vmatprep.subr.bf16.mxu0 0
        %460 = vmatpush1.bf16.msra.mxu0 0
        %461 = vmatprep.subr.bf16.mxu0 0
        %462 = vmatpush1.bf16.msra.mxu0 0
        %463 = vmatprep.subr.bf16.mxu0 0
        %464 = vmatpush1.bf16.msra.mxu0 0
        %465 = vmatprep.subr.bf16.mxu0 0
        %466 = vmatpush1.bf16.msra.mxu0 0
        %467 = vmatprep.subr.bf16.mxu0 0
        %468 = vmatpush1.bf16.msra.mxu0 0
        %469 = vmatprep.subr.bf16.mxu0 0
        %470 = vmatpush1.bf16.msra.mxu0 0
        %471 = vmatprep.subr.bf16.mxu0 0
        %472 = vmatpush1.bf16.msra.mxu0 0
        %473 = vmatprep.mubr.bf16.mxu0 0
        %474 = vmatmul.mubr.bf16.gmra.mrb[0].mxu0 %v361
        %v475 = vpop.f32.mrb[0].mxu0
        %v476 = vadd.f32 %v295, %v475
        %v477 = vpop.f32.mrb[0].mxu0
        %v478 = vpop.f32.mrb[0].mxu0
        %v479 = vadd.f32 %v295, %v478
        %v480 = vpop.f32.mrb[0].mxu0
        %481 = vmatprep.mubr.bf16.mxu0 0
        %482 = vmatmul.mubr.bf16.gmra.mrb[0].mxu0 %v362
        %v483 = vpop.f32.mrb[0].mxu0
        %v484 = vadd.f32 %v295, %v483
        %v485 = vpop.f32.mrb[0].mxu0
        %v486 = vpop.f32.mrb[0].mxu0
        %v487 = vadd.f32 %v295, %v486
        %v488 = vpop.f32.mrb[0].mxu0
        %489 = vmatprep.mubr.bf16.mxu0 0
        %490 = vmatmul.mubr.bf16.gmra.mrb[0].mxu0 %v363
        %v491 = vpop.f32.mrb[0].mxu0
        %v492 = vadd.f32 %v295, %v491
        %v493 = vpop.f32.mrb[0].mxu0
        %v494 = vpop.f32.mrb[0].mxu0
        %v495 = vadd.f32 %v295, %v494
        %v496 = vpop.f32.mrb[0].mxu0
        %497 = vmatprep.mubr.bf16.mxu0 0
        %498 = vmatmul.mubr.bf16.gmra.mrb[0].mxu0 %v364
        %v499 = vpop.f32.mrb[0].mxu0
        %v500 = vadd.f32 %v295, %v499
        %v501 = vpop.f32.mrb[0].mxu0
        %v502 = vpop.f32.mrb[0].mxu0
        %v503 = vadd.f32 %v295, %v502
        %v504 = vpop.f32.mrb[0].mxu0
        %505 = vmatprep.mubr.bf16.mxu0 0
        %506 = vmatmul.mubr.bf16.gmra.mrb[0].mxu0 %v365
        %v507 = vpop.f32.mrb[0].mxu0
        %v508 = vadd.f32 %v295, %v507
        %v509 = vpop.f32.mrb[0].mxu0
        %v510 = vpop.f32.mrb[0].mxu0
        %v511 = vadd.f32 %v295, %v510
        %v512 = vpop.f32.mrb[0].mxu0
        %513 = vmatprep.mubr.bf16.mxu0 0
        %514 = vmatmul.mubr.bf16.gmra.mrb[0].mxu0 %v366
        %v515 = vpop.f32.mrb[0].mxu0
        %v516 = vadd.f32 %v295, %v515
        %v517 = vpop.f32.mrb[0].mxu0
        %v518 = vpop.f32.mrb[0].mxu0
        %v519 = vadd.f32 %v295, %v518
        %v520 = vpop.f32.mrb[0].mxu0
        %521 = vmatprep.mubr.bf16.mxu0 0
        %522 = vmatmul.mubr.bf16.gmra.mrb[0].mxu0 %v367
        %v523 = vpop.f32.mrb[0].mxu0
        %v524 = vadd.f32 %v295, %v523
        %v525 = vpop.f32.mrb[0].mxu0
        %v526 = vpop.f32.mrb[0].mxu0
        %v527 = vadd.f32 %v295, %v526
        %v528 = vpop.f32.mrb[0].mxu0
        %529 = vmatprep.mubr.bf16.mxu0 0
        %530 = vmatmul.mubr.bf16.gmra.mrb[0].mxu0 %v368
        %v531 = vpop.f32.mrb[0].mxu0
        %v532 = vadd.f32 %v295, %v531
        %v533 = vpop.f32.mrb[0].mxu0
        %v534 = vpop.f32.mrb[0].mxu0
        %v535 = vadd.f32 %v295, %v534
        %v536 = vpop.f32.mrb[0].mxu0
        %537 = vmatprep.mubr.bf16.mxu0 0
        %538 = vmatmul.mubr.bf16.gmra.mrb[0].mxu0 %v369
        %v539 = vpop.f32.mrb[0].mxu0
        %v540 = vadd.f32 %v295, %v539
        %v541 = vpop.f32.mrb[0].mxu0
        %v542 = vpop.f32.mrb[0].mxu0
        %v543 = vadd.f32 %v295, %v542
        %v544 = vpop.f32.mrb[0].mxu0
        %545 = vmatprep.mubr.bf16.mxu0 0
        %546 = vmatmul.mubr.bf16.gmra.mrb[0].mxu0 %v370
        %v547 = vpop.f32.mrb[0].mxu0
        %v548 = vadd.f32 %v295, %v547
        %v549 = vpop.f32.mrb[0].mxu0
        %v550 = vpop.f32.mrb[0].mxu0
        %v551 = vadd.f32 %v295, %v550
        %v552 = vpop.f32.mrb[0].mxu0
        %553 = vmatprep.mubr.bf16.mxu0 0
        %554 = vmatmul.mubr.bf16.gmra.mrb[0].mxu0 %v371
        %v555 = vpop.f32.mrb[0].mxu0
        %v556 = vadd.f32 %v295, %v555
        %v557 = vpop.f32.mrb[0].mxu0
        %v558 = vpop.f32.mrb[0].mxu0
        %v559 = vadd.f32 %v295, %v558
        %v560 = vpop.f32.mrb[0].mxu0
        %561 = vmatprep.mubr.bf16.mxu0 0
        %562 = vmatmul.mubr.bf16.gmra.mrb[0].mxu0 %v372
        %v563 = vpop.f32.mrb[0].mxu0
        %v564 = vadd.f32 %v295, %v563
        %v565 = vpop.f32.mrb[0].mxu0
        %v566 = vpop.f32.mrb[0].mxu0
        %v567 = vadd.f32 %v295, %v566
        %v568 = vpop.f32.mrb[0].mxu0
        %569 = vmatprep.mubr.bf16.mxu0 0
        %570 = vmatmul.mubr.bf16.gmra.mrb[0].mxu0 %v373
        %v571 = vpop.f32.mrb[0].mxu0
        %v572 = vadd.f32 %v295, %v571
        %v573 = vpop.f32.mrb[0].mxu0
        %v574 = vpop.f32.mrb[0].mxu0
        %v575 = vadd.f32 %v295, %v574
        %v576 = vpop.f32.mrb[0].mxu0
        %577 = vmatprep.mubr.bf16.mxu0 0
        %578 = vmatmul.mubr.bf16.gmra.mrb[0].mxu0 %v374
        %v579 = vpop.f32.mrb[0].mxu0
        %v580 = vadd.f32 %v295, %v579
        %v581 = vpop.f32.mrb[0].mxu0
        %v582 = vpop.f32.mrb[0].mxu0
        %v583 = vadd.f32 %v295, %v582
        %v584 = vpop.f32.mrb[0].mxu0
        %585 = vmatprep.mubr.bf16.mxu0 0
        %586 = vmatmul.mubr.bf16.gmra.mrb[0].mxu0 %v375
        %v587 = vpop.f32.mrb[0].mxu0
        %v588 = vadd.f32 %v295, %v587
        %v589 = vpop.f32.mrb[0].mxu0
        %v590 = vpop.f32.mrb[0].mxu0
        %v591 = vadd.f32 %v295, %v590
        %v592 = vpop.f32.mrb[0].mxu0
        %593 = vmatprep.mubr.bf16.mxu0 0
        %594 = vmatmul.mubr.bf16.gmra.mrb[0].mxu0 %v376
        %v595 = vpop.f32.mrb[0].mxu0
        %v596 = vadd.f32 %v295, %v595
        %v597 = vpop.f32.mrb[0].mxu0
        %v598 = vpop.f32.mrb[0].mxu0
        %v599 = vadd.f32 %v295, %v598
        %v600 = vpop.f32.mrb[0].mxu0
        %601 = vdwg.mxu0
        %v602 = vmax.f32 %v476, 0.0
        %v603 = vmax.f32 %v479, 0.0
        %v604 = vmax.f32 %v484, 0.0
        %v605 = vmax.f32 %v487, 0.0
        %v606 = vmax.f32 %v492, 0.0
        %v607 = vmax.f32 %v495, 0.0
        %v608 = vmax.f32 %v500, 0.0
        %v609 = vmax.f32 %v503, 0.0
        %v610 = vmax.f32 %v508, 0.0
        %v611 = vmax.f32 %v511, 0.0
        %v612 = vmax.f32 %v516, 0.0
        %v613 = vmax.f32 %v519, 0.0
        %v614 = vmax.f32 %v524, 0.0
        %v615 = vmax.f32 %v527, 0.0
        %v616 = vmax.f32 %v532, 0.0
        %v617 = vmax.f32 %v535, 0.0
        %v618 = vmax.f32 %v540, 0.0
        %v619 = vmax.f32 %v543, 0.0
        %v620 = vmax.f32 %v548, 0.0
        %v621 = vmax.f32 %v551, 0.0
        %v622 = vmax.f32 %v556, 0.0
        %v623 = vmax.f32 %v559, 0.0
        %v624 = vmax.f32 %v564, 0.0
        %v625 = vmax.f32 %v567, 0.0
        %v626 = vmax.f32 %v572, 0.0
        %v627 = vmax.f32 %v575, 0.0
        %v628 = vmax.f32 %v580, 0.0
        %v629 = vmax.f32 %v583, 0.0
        %v630 = vmax.f32 %v588, 0.0
        %v631 = vmax.f32 %v591, 0.0
        %v632 = vmax.f32 %v596, 0.0
        %v633 = vmax.f32 %v599, 0.0
        %v634 = vpack.c.bf16 %v603, %v602
        %v635 = vpack.c.bf16 %v605, %v604
        %v636 = vpack.c.bf16 %v607, %v606
        %v637 = vpack.c.bf16 %v609, %v608
        %v638 = vpack.c.bf16 %v611, %v610
        %v639 = vpack.c.bf16 %v613, %v612
        %v640 = vpack.c.bf16 %v615, %v614
        %v641 = vpack.c.bf16 %v617, %v616
        %v642 = vpack.c.bf16 %v619, %v618
        %v643 = vpack.c.bf16 %v621, %v620
        %v644 = vpack.c.bf16 %v623, %v622
        %v645 = vpack.c.bf16 %v625, %v624
        %v646 = vpack.c.bf16 %v627, %v626
        %v647 = vpack.c.bf16 %v629, %v628
        %v648 = vpack.c.bf16 %v631, %v630
        %v649 = vpack.c.bf16 %v633, %v632
        %v666 = vunpack.c.l.b16 %v634
        %v667 = vunpack.c.h.b16 %v634
        %v668 = vunpack.c.l.b16 %v635
        %v669 = vunpack.c.h.b16 %v635
        %v670 = vunpack.c.l.b16 %v636
        %v671 = vunpack.c.h.b16 %v636
        %v672 = vunpack.c.l.b16 %v637
        %v673 = vunpack.c.h.b16 %v637
        %v674 = vunpack.c.l.b16 %v638
        %v675 = vunpack.c.h.b16 %v638
        %v676 = vunpack.c.l.b16 %v639
        %v677 = vunpack.c.h.b16 %v639
        %v678 = vunpack.c.l.b16 %v640
        %v679 = vunpack.c.h.b16 %v640
        %v680 = vunpack.c.l.b16 %v641
        %v681 = vunpack.c.h.b16 %v641
        %v682 = vunpack.c.l.b16 %v642
        %v683 = vunpack.c.h.b16 %v642
        %v684 = vunpack.c.l.b16 %v643
        %v685 = vunpack.c.h.b16 %v643
        %v686 = vunpack.c.l.b16 %v644
        %v687 = vunpack.c.h.b16 %v644
        %v688 = vunpack.c.l.b16 %v645
        %v689 = vunpack.c.h.b16 %v645
        %v690 = vunpack.c.l.b16 %v646
        %v691 = vunpack.c.h.b16 %v646
        %v692 = vunpack.c.l.b16 %v647
        %v693 = vunpack.c.h.b16 %v647
        %v694 = vunpack.c.l.b16 %v648
        %v695 = vunpack.c.h.b16 %v648
        %v696 = vunpack.c.l.b16 %v649
        %v697 = vunpack.c.h.b16 %v649
        %v698 = vpack.c.b16 %v666, %v666
        %v699 = vpack.c.b16 %v667, %v667
        %v700 = vpack.c.b16 %v668, %v668
        %v701 = vpack.c.b16 %v669, %v669
        %v702 = vpack.c.b16 %v670, %v670
        %v703 = vpack.c.b16 %v671, %v671
        %v704 = vpack.c.b16 %v672, %v672
        %v705 = vpack.c.b16 %v673, %v673
        %v706 = vpack.c.b16 %v674, %v674
        %v707 = vpack.c.b16 %v675, %v675
        %v708 = vpack.c.b16 %v676, %v676
        %v709 = vpack.c.b16 %v677, %v677
        %v710 = vpack.c.b16 %v678, %v678
        %v711 = vpack.c.b16 %v679, %v679
        %v712 = vpack.c.b16 %v680, %v680
        %v713 = vpack.c.b16 %v681, %v681
        %v714 = vpack.c.b16 %v682, %v682
        %v715 = vpack.c.b16 %v683, %v683
        %v716 = vpack.c.b16 %v684, %v684
        %v717 = vpack.c.b16 %v685, %v685
        %v718 = vpack.c.b16 %v686, %v686
        %v719 = vpack.c.b16 %v687, %v687
        %v720 = vpack.c.b16 %v688, %v688
        %v721 = vpack.c.b16 %v689, %v689
        %v722 = vpack.c.b16 %v690, %v690
        %v723 = vpack.c.b16 %v691, %v691
        %v724 = vpack.c.b16 %v692, %v692
        %v725 = vpack.c.b16 %v693, %v693
        %v726 = vpack.c.b16 %v694, %v694
        %v727 = vpack.c.b16 %v695, %v695
        %v728 = vpack.c.b16 %v696, %v696
        %v729 = vpack.c.b16 %v697, %v697
        %762 = vst [vmem:[%s235] sm:$0xf] %v698
        %763 = vst [vmem:[%s235 + $0x4] sm:$0xf] %v699
        %764 = vst [vmem:[%s235 + $0x8] sm:$0xf] %v700
        %765 = vst [vmem:[%s235 + $0xc] sm:$0xf] %v701
        %766 = vst [vmem:[%s235 + $0x10] sm:$0xf] %v702
        %767 = vst [vmem:[%s235 + $0x14] sm:$0xf] %v703
        %768 = vst [vmem:[%s235 + $0x18] sm:$0xf] %v704
        %769 = vst [vmem:[%s235 + $0x1c] sm:$0xf] %v705
        %770 = vst [vmem:[%s235 + $0x20] sm:$0xf] %v706
        %771 = vst [vmem:[%s235 + $0x24] sm:$0xf] %v707
        %772 = vst [vmem:[%s235 + $0x28] sm:$0xf] %v708
        %773 = vst [vmem:[%s235 + $0x2c] sm:$0xf] %v709
        %774 = vst [vmem:[%s235 + $0x30] sm:$0xf] %v710
        %775 = vst [vmem:[%s235 + $0x34] sm:$0xf] %v711
        %776 = vst [vmem:[%s235 + $0x38] sm:$0xf] %v712
        %777 = vst [vmem:[%s235 + $0x3c] sm:$0xf] %v713
        %778 = vst [vmem:[%s235 + $0x40] sm:$0xf] %v714
        %779 = vst [vmem:[%s235 + $0x44] sm:$0xf] %v715
        %780 = vst [vmem:[%s235 + $0x48] sm:$0xf] %v716
        %781 = vst [vmem:[%s235 + $0x4c] sm:$0xf] %v717
        %782 = vst [vmem:[%s235 + $0x50] sm:$0xf] %v718
        %783 = vst [vmem:[%s235 + $0x54] sm:$0xf] %v719
        %784 = vst [vmem:[%s235 + $0x58] sm:$0xf] %v720
        %785 = vst [vmem:[%s235 + $0x5c] sm:$0xf] %v721
        %786 = vst [vmem:[%s235 + $0x60] sm:$0xf] %v722
        %787 = vst [vmem:[%s235 + $0x64] sm:$0xf] %v723
        %788 = vst [vmem:[%s235 + $0x68] sm:$0xf] %v724
        %789 = vst [vmem:[%s235 + $0x6c] sm:$0xf] %v725
        %790 = vst [vmem:[%s235 + $0x70] sm:$0xf] %v726
        %791 = vst [vmem:[%s235 + $0x74] sm:$0xf] %v727
        %792 = vst [vmem:[%s235 + $0x78] sm:$0xf] %v728
        %793 = vst [vmem:[%s235 + $0x7c] sm:$0xf] %v729
        %s794 = sand.u32 %s121, 1
        %s795 = scalar_lea.sflag [#allocation4], %s794
        %s796 = sand.u32 %s121, 1
        %s797 = smul.addr %s796, 128
        %s798 = scalar_lea.vmem [#allocation7], %s797
        // Predicated region
        $region41: #{tpu_custom_call.1} parent=31 // pred_check
          %p799 = pneg %p131
        $region42: #{tpu_custom_call.1} parent=31 // pred_check_branch
          %801 = sbr.rel (%p799) target = $region44
        $region43: #{tpu_custom_call.1} parent=31 // pred_region
          %s802 = smul.u32 32, %s25
          %s804 = ssub.s32 2048, 2048
          %805 = vsyncadd %s795, %s804
          %s806 = sadd.s32 %s26, %s802
          %s807 = smul.addr %s806, 64
          %s808 = scalar_lea.hbm %s3, %s807
          %s809 = sshll.u32 %s798, 4
          %s810 = int_to_ptr.vmem [resolvable:$true] %s809
          %815 = dma.vmem_to_hbm [thread:$0]  %s810, 2048, %s808, %s795, 64, 64, 4
        $region44: #{tpu_custom_call.1} parent=31 // pred_fallthru
          _
      $region32: #{tpu_custom_call.1} parent=5 // pred_fallthru
        _
      %p816 = scmp.le.s32.totalorder 2, %s16
      // Predicated region
      $region45: #{tpu_custom_call.1} parent=5 // pred_check
        %p817 = pneg %p816
      $region46: #{tpu_custom_call.1} parent=5 // pred_check_branch
        %819 = sbr.rel (%p817) target = $region48
      $region47: #{tpu_custom_call.1} parent=5 // pred_region
        %s820 = ssub.s32 %s16, 2
        // Predicated region
        $region49: #{tpu_custom_call.1} parent=47 // pred_check
          %p821 = pneg %p137
        $region50: #{tpu_custom_call.1} parent=47 // pred_check_branch
          %823 = sbr.rel (%p821) target = $region52
        $region51: #{tpu_custom_call.1} parent=47 // pred_region
          %s824 = sand.u32 %s122, 1
          %s825 = scalar_lea.sflag [#allocation4], %s824
          %s826 = sand.u32 %s122, 1
          %s827 = smul.addr %s826, 128
          %s828 = scalar_lea.vmem [#allocation7], %s827
          %829 = dma.done %s825, 2048
        $region52: #{tpu_custom_call.1} parent=47 // pred_fallthru
          _
      $region48: #{tpu_custom_call.1} parent=5 // pred_fallthru
        _
    $region6: #{tpu_custom_call.1} parent=1 // loop_footer
      %s20 = sadd.s32 1, %s16
    $region7: #{tpu_custom_call.1} parent=1 // loop_footer_branch
      %15 = sbr.rel target = $region3
    $region8: #{tpu_custom_call.1} parent=1 // loop_exit
      _
    %830 = vsyncpa [#allocation3], 1
    %s831 = scalar_lea.sflag [#allocation3], 1
    %832 = vsyncpa %s831, 1
    %833 = vsyncpa [#allocation6], 1
    %834 = vsyncpa [#allocation4], 1
    %s835 = scalar_lea.sflag [#allocation4], 1
    %836 = vsyncpa %s835, 1

</llo_original>
